<compile_context>
chip_gen: v7x
topology: tpu7x:2x2x1
jax: 0.10.0
libtpu: 0.0.40
codegen_flags: <defaults>
</compile_context>

<pallas_src>
import numpy as np

import jax
import jax.numpy as jnp
from jax.experimental import pallas as pl
from jax.experimental.pallas import tpu as pltpu


# ----------------------------- small helpers ----------------------------------

def _round_up(x, m):
    return ((x + m - 1) // m) * m


def _make_window_np(kind, win_length, n_fft):
    i = np.arange(win_length, dtype=np.float64)
    if kind == 'hann':
        w = 0.5 * (1.0 - np.cos(2.0 * np.pi * i / win_length))     # periodic hann
    elif kind == 'hamming':
        w = 0.54 - 0.46 * np.cos(2.0 * np.pi * i / win_length)     # periodic hamming
    else:
        raise ValueError(kind)
    if win_length < n_fft:      # torch.istft centers a short window inside the frame
        left = (n_fft - win_length) // 2
        w = np.pad(w, (left, n_fft - win_length - left))
    return w


def _packed_idft_basis_np(n_fft, window, k_pad):
    """(k_pad, n_fft) basis with the synthesis window folded in so that
         frames = [Re bins 1..n_fft/2 | Im bins 1..n_fft/2 | 0 pad] @ basis
                == irfft(X, n_fft) * window,   X having a zero DC bin (the module
                                               pads DC with zeros before istft).
    Rows [0, F) hold the real-part basis for bins 1..n_fft/2, rows [F, 2F) the
    imaginary-part basis.  The imag-Nyquist row is identically zero, matching the
    one-sided irfft/torch.istft convention (imag of DC/Nyquist ignored)."""
    f = n_fft // 2
    k = np.arange(1, f + 1, dtype=np.float64)[:, None]
    n = np.arange(n_fft, dtype=np.float64)[None, :]
    ang = 2.0 * np.pi * k * n / n_fft
    scale = np.where(k == f, 1.0, 2.0) / n_fft
    basis = np.zeros((k_pad, n_fft), np.float64)
    basis[:f] = scale * np.cos(ang) * window[None, :]
    basis[f:2 * f] = -scale * np.sin(ang) * window[None, :]
    return basis


def _vmem_capacity_bytes():
    """Per-core VMEM capacity (generation-aware); conservative fallback."""
    try:
        return int(pltpu.get_tpu_info().vmem_capacity_bytes)
    except Exception:
        return 64 << 20          # v7x per-TensorCore VMEM: safe on every generation


def _pick_batch_block(batch, t_pad, k_pad, n_fft, hop, acc_rows_pad, out_rows, vmem_cap):
    """Batch elements per grid step.  On small-VMEM (v7x-like, 2 TCs) parts keep
    >= 2 grid steps so both TensorCores get work; on v5e/v6e (128 MiB, 1 TC) just
    take the largest block that fits the budget to amortize per-step overhead."""
    prefer_two_steps = vmem_cap <= (64 << 20)
    max_block = 8 if prefer_two_steps else 16
    budget = min(vmem_cap // 3, 40 << 20)
    base = k_pad * n_fft * 2 + out_rows * hop * 4            # grid-constant operands (1 copy)

    def block_bytes(blk):
        return (base
                + 2 * blk * t_pad * k_pad * 2                # spec blocks (bf16, 2x buffered)
                + 2 * blk * out_rows * hop * 4               # output blocks (2x buffered)
                + blk * acc_rows_pad * hop * 4               # OLA accumulator scratch
                + 2 * blk * t_pad * hop * 4)                 # slab matmul temporaries headroom

    divisors = [b for b in range(1, min(max_block, batch) + 1) if batch % b == 0]
    viable = [b for b in divisors if block_bytes(b) <= budget] or [1]
    if prefer_two_steps:
        multi = [b for b in viable if batch // b >= 2]
        if multi:
            return max(multi)
    return max(viable)


# ------------------------------- Pallas ISTFT ----------------------------------

def istft_pallas(spec_packed, basis, inv_env_slab, *, batch, n_frames, n_frames_pad,
                 n_fft, hop):
    """torch.istft semantics (center=True, onesided=True, length=None).

    spec_packed  : (batch * n_frames_pad, Kpad) bf16, rows grouped per batch element,
                   columns = [Re bins 1..n_fft/2 | Im bins 1..n_fft/2 | zero pad].
    basis        : (Kpad, n_fft) bf16 window-folded one-sided inverse-DFT basis.
    inv_env_slab : (n_frames - 1, hop) f32 reciprocal squared-window OLA envelope,
                   already center-trimmed and in slab layout.
    returns      : (batch, n_frames - 1, hop) f32   (reshape to (batch, samples)).
    """
    b2, t, t_pad = batch, n_frames, n_frames_pad
    bt, k_pad = spec_packed.shape
    assert bt == b2 * t_pad
    assert t >= 2
    assert n_fft % hop == 0 and (n_fft // 2) % hop == 0, \
        "slab overlap-add assumes hop | n_fft and hop | n_fft//2 (true for hop=n_fft//4)"
    r = n_fft // hop                        # frames overlapping one hop of output
    trim = (n_fft // 2) // hop              # rows dropped by center-trimming
    out_rows = t - 1
    acc_rows = t_pad + r - 1
    acc_rows_pad = _round_up(acc_rows, 8)   # sublane-aligned accumulator rows

    vmem_cap = _vmem_capacity_bytes()
    bblk = _pick_batch_block(b2, t_pad, k_pad, n_fft, hop, acc_rows_pad, out_rows, vmem_cap)
    grid = (b2 // bblk,)

    def kernel(s_ref, b_ref, ie_ref, o_ref, acc_ref):
        # zero the OLA accumulator for this batch block
        acc_ref[...] = jnp.zeros_like(acc_ref)
        spec = s_ref[...]                                     # (bblk*t_pad, Kpad) bf16
        # r column-slab MXU matmuls; each slab is overlap-added in place into the
        # VMEM scratch accumulator (only r slab adds, all static sublane-dense ops).
        for j in range(r):
            slab = jnp.dot(spec, b_ref[:, j * hop:(j + 1) * hop],
                           preferred_element_type=jnp.float32)    # (bblk*t_pad, hop) f32
            acc_ref[:, j:j + t_pad, :] += slab.reshape(bblk, t_pad, hop)
        # Center-trim and normalise by the squared-window envelope: one 3-D store.
        o_ref[...] = acc_ref[:, trim:trim + out_rows, :] * ie_ref[...]

    est = (2 * bblk * t_pad * k_pad * 2         # spec blocks (bf16, double-buffered)
           + k_pad * n_fft * 2                  # basis (single VMEM copy)
           + out_rows * hop * 4                 # inverse envelope (single VMEM copy)
           + 2 * bblk * out_rows * hop * 4      # output blocks (double-buffered)
           + bblk * acc_rows_pad * hop * 4      # OLA accumulator scratch
           + 2 * bblk * t_pad * hop * 4)        # slab temporaries headroom
    vmem_limit = int(min(max(2 * est, 32 << 20), min(vmem_cap, 128 << 20) * 3 // 4))

    return pl.pallas_call(
        kernel,
        out_shape=jax.ShapeDtypeStruct((b2, out_rows, hop), jnp.float32),
        grid=grid,
        in_specs=[
            pl.BlockSpec((bblk * t_pad, k_pad), lambda b: (b, 0)),
            # Grid-constant operands: place the whole array in VMEM once (no
            # per-step pipelining / double-buffering -> half the VMEM footprint).
            pl.BlockSpec(memory_space=pltpu.MemorySpace.VMEM),
            pl.BlockSpec(memory_space=pltpu.MemorySpace.VMEM),
        ],
        out_specs=pl.BlockSpec((bblk, out_rows, hop), lambda b: (b, 0, 0)),
        scratch_shapes=[pltpu.VMEM((bblk, acc_rows_pad, hop), jnp.float32)],
        compiler_params=pltpu.CompilerParams(
            dimension_semantics=("parallel",),
            vmem_limit_bytes=vmem_limit,
        ),
        # TODO(synk): for very long audio on v7x, add a T-tiling grid axis
        # ("arbitrary") with a (bblk, r-1, hop) OLA carry in scratch so the per-step
        # spec block stays bounded independently of track length.
    )(spec_packed, basis, inv_env_slab)


def istft_ref(spec_r, spec_i, window, n_fft, hop):
    """Pure-JAX reference (irfft based), used only for the correctness check."""
    X = spec_r + 1j * spec_i                                      # (B2, T, F_full)
    frames = jnp.fft.irfft(X, n=n_fft, axis=-1).astype(jnp.float32) * window[None, None, :]
    B2, T, _ = frames.shape
    full_len = n_fft + (T - 1) * hop
    y = jnp.zeros((B2, full_len), jnp.float32)
    env = jnp.zeros((full_len,), jnp.float32)
    w2 = window * window
    for t in range(T):
        y = y.at[:, t * hop:t * hop + n_fft].add(frames[:, t, :])
        env = env.at[t * hop:t * hop + n_fft].add(w2)
    start = n_fft // 2
    out_len = (T - 1) * hop
    return y[:, start:start + out_len] / env[start:start + out_len]


# ---------------------------------- BackEnd ------------------------------------

class BackEndPallas:
    """JAX/Pallas port of BackEnd (channel='stereo'; modes 'cplx' and 'mag_phase')."""

    def __init__(self, channel='stereo', n_fft=2048, hop_length=None, win_length=None,
                 window='hann', eps=1e-7, orig_freq=44100, new_freq=16000):
        self.channel = channel
        self.n_fft = n_fft
        self.hop_length = n_fft // 4 if hop_length is None else hop_length
        self.win_length = n_fft if win_length is None else win_length
        self.eps = eps
        self._win_np = _make_window_np(window, self.win_length, n_fft)
        self.window = jnp.asarray(self._win_np, dtype=jnp.float32)   # reference path
        # Exact K packing: K = 2 * (n_fft//2) = n_fft (multiple of 128/256); the
        # always-zero DC columns are dropped entirely (no wasted MXU K cycles).
        self.k_pad = _round_up(2 * (n_fft // 2), 128)
        # Window-folded, K-packed, bf16 inverse-DFT basis -> fused MXU matmuls.
        # bf16 spec/basis with f32 accumulation is an intentional accuracy/throughput
        # trade (see relaxed tolerances in the test below).
        self.basis_packed = jnp.asarray(
            _packed_idft_basis_np(n_fft, self._win_np, self.k_pad), dtype=jnp.bfloat16)
        self._env_cache = {}
        # TODO(synk): torchaudio Resample transforms from __init__ are never used in
        # forward(); not ported.

    # ---- helpers -------------------------------------------------------------
    def magphase_to_cplx(self, magphase_spec):
        real = magphase_spec[..., 0] * jnp.cos(magphase_spec[..., 1])
        imag = magphase_spec[..., 0] * jnp.sin(magphase_spec[..., 1])
        return jnp.concatenate([real[..., None], imag[..., None]], axis=-1)

    def _inv_env_slab(self, n_frames):
        """1 / OLA'd window^2, center-trimmed, in (T-1, hop) slab layout (numpy, cached)."""
        if n_frames not in self._env_cache:
            n_fft, hop = self.n_fft, self.hop_length
            w2 = self._win_np * self._win_np
            full_len = n_fft + (n_frames - 1) * hop
            env = np.zeros(full_len, np.float64)
            for t in range(n_frames):
                env[t * hop:t * hop + n_fft] += w2
            start, out_len = n_fft // 2, (n_frames - 1) * hop
            # eps floor instead of torch.istft's hard NaN/error on degenerate envelopes
            inv = 1.0 / np.maximum(env[start:start + out_len], 1e-11)
            self._env_cache[n_frames] = jnp.asarray(
                inv.reshape(n_frames - 1, hop), dtype=jnp.float32)
        return self._env_cache[n_frames]

    def _pack_spec(self, re, im, n_frames_pad):
        """(B2, F, T) real/imag (no DC bin) -> (B2*T_pad, Kpad) bf16 K-packed spec."""
        b2, f, t = re.shape
        # cast to bf16 BEFORE the transpose (halves the bytes moved), no zero concats
        spec = jnp.concatenate(
            [re.astype(jnp.bfloat16), im.astype(jnp.bfloat16)], axis=1)   # (B2, 2F, T)
        spec = jnp.swapaxes(spec, 1, 2)                                   # (B2, T, 2F)
        pad_k = self.k_pad - 2 * f
        pad_t = n_frames_pad - t
        if pad_k or pad_t:
            spec = jnp.pad(spec, ((0, 0), (0, pad_t), (0, pad_k)))
        return spec.reshape(b2 * n_frames_pad, self.k_pad)

    def _istft(self, re, im, use_pallas=True):
        """re/im: (B2, F=n_fft//2, T) -> waveform (B2, (T-1)*hop), torch.istft semantics."""
        b2, f, t = re.shape
        hop = self.hop_length
        if use_pallas:
            t_pad = _round_up(t, 8)
            spec = self._pack_spec(re, im, t_pad)
            out = istft_pallas(spec, self.basis_packed, self._inv_env_slab(t),
                               batch=b2, n_frames=t, n_frames_pad=t_pad,
                               n_fft=self.n_fft, hop=hop)
            return out.reshape(b2, (t - 1) * hop)
        # pure-JAX reference (irfft based)
        zdc = jnp.zeros((b2, 1, t), re.dtype)
        sr = jnp.transpose(jnp.concatenate([zdc, re], axis=1), (0, 2, 1))
        si = jnp.transpose(jnp.concatenate([zdc, im], axis=1), (0, 2, 1))
        return istft_ref(sr, si, self.window, self.n_fft, hop)

    # ---- forward -------------------------------------------------------------
    def forward(self, input, phase, mode, use_pallas=True):
        # `input` is NCHW (B, C, F=n_fft//2, T), exactly like the PyTorch module.
        B = input.shape[0]
        back_output_list = []
        channel_count = 0
        output = None
        for cur_mode in mode:
            if cur_mode == 'cplx':
                if self.channel != 'stereo':
                    raise NotImplementedError  # TODO(synk): mono 'cplx' path not ported
                cc = channel_count
                re = jnp.concatenate([input[:, cc + 0], input[:, cc + 2]], axis=0)  # (2B,F,T)
                im = jnp.concatenate([input[:, cc + 1], input[:, cc + 3]], axis=0)
                wav = self._istft(re, im, use_pallas)                               # (2B, S)
                output = jnp.stack([wav[:B], wav[B:]], axis=1)                      # (B,2,S)
                channel_count += 4
                back_output_list.append(output)
            elif cur_mode == 'mag_phase':
                if self.channel != 'stereo':
                    raise NotImplementedError  # TODO(synk): mono 'mag_phase' path not ported
                cc = channel_count
                mag = jnp.concatenate([input[:, cc + 0], input[:, cc + 2]], axis=0)
                ph = jnp.concatenate([input[:, cc + 1], input[:, cc + 3]], axis=0)
                re = mag * jnp.cos(ph)
                im = mag * jnp.sin(ph)
                channel_count += 4
                wav = self._istft(re, im, use_pallas)
                output = jnp.stack([wav[:B], wav[B:]], axis=1)
                channel_count += 4        # quirk kept from the reference implementation
                back_output_list.append(output)
            elif cur_mode == 'mag':
                raise NotImplementedError  # TODO(synk): 'mag' mode (external phase input) not ported
            elif cur_mode == 'griff':
                raise NotImplementedError  # TODO(synk): griffin_lim (random phase + 100 STFT/ISTFT iterations) not ported
            # reproduce the reference module's unconditional double-append quirk
            back_output_list.append(output)

        if not back_output_list:
            raise NameError('NameError at BackEnd: check using features for back-end')
        elif len(mode) != 1:
            back_output = jnp.concatenate(back_output_list, axis=1)
        else:
            back_output = back_output_list[0]
        return back_output


# ------------------------------------ main --------------------------------------

if __name__ == "__main__":
    N_FFT = 256                        # small but fully consistent with the module (ctor param)
    B, C, F, T = 2, 4, N_FFT // 2, 8   # stereo complex spec: C = 4 (re_L, im_L, re_R, im_R)

    key = jax.random.PRNGKey(0)
    k1, k2 = jax.random.split(key)
    inp = jax.random.normal(k1, (B, C, F, T), dtype=jnp.float32)
    # `phase` is only used by the (un-ported) 'mag' mode; pass a plausible tensor anyway.
    phase = jax.random.uniform(k2, (B, F + 1, T, 2), minval=-np.pi, maxval=np.pi,
                               dtype=jnp.float32)

    backend = BackEndPallas(channel='stereo', n_fft=N_FFT)

    # 'cplx' mode  (bf16 MXU inputs, f32 accumulation -> compare with relaxed tolerance)
    out_cplx = jax.block_until_ready(backend.forward(inp, phase, mode=['cplx']))
    ref_cplx = jax.block_until_ready(backend.forward(inp, phase, mode=['cplx'], use_pallas=False))
    assert out_cplx.shape == (B, 2, (T - 1) * (N_FFT // 4))
    np.testing.assert_allclose(np.asarray(out_cplx), np.asarray(ref_cplx), rtol=2e-2, atol=3e-3)

    # 'mag_phase' mode (channels interpreted as mag_L, ph_L, mag_R, ph_R)
    out_mp = jax.block_until_ready(backend.forward(inp, phase, mode=['mag_phase']))
    ref_mp = jax.block_until_ready(backend.forward(inp, phase, mode=['mag_phase'], use_pallas=False))
    np.testing.assert_allclose(np.asarray(out_mp), np.asarray(ref_mp), rtol=2e-2, atol=3e-3)

    print("KERNEL_OK")
</pallas_src>

<mosaic_0001>
module attributes {stable_mosaic.version = 11 : i64} {
  func.func @kernel(%arg0: i32, %arg1: memref<16x256xbf16, #tpu.memory_space<vmem>>, %arg2: memref<256x256xbf16, #tpu.memory_space<vmem>>, %arg3: memref<7x64xf32, #tpu.memory_space<vmem>>, %arg4: memref<2x7x64xf32, #tpu.memory_space<vmem>>, %arg5: memref<2x16x64xf32, #tpu.memory_space<vmem>>) attributes {dimension_semantics = [#tpu.dimension_semantics<parallel>], iteration_bounds = array<i64: 2>, scalar_prefetch = 0 : i64, scratch_operands = 1 : i64, tpu.core_type = #tpu.core_type<tc>, window_params = [{transform_indices = @transform_0, window_bounds = array<i64: 16, 256>}, {pipeline_mode = #tpu.pipeline_mode<synchronous>, transform_indices = @transform_1, window_bounds = array<i64: 256, 256>}, {pipeline_mode = #tpu.pipeline_mode<synchronous>, transform_indices = @transform_2, window_bounds = array<i64: 7, 64>}, {transform_indices = @transform_3, window_bounds = array<i64: 2, 7, 64>}]} {
    %cst = arith.constant 0.000000e+00 : f32
    %0 = vector.broadcast %cst : f32 to vector<2x16x64xf32>
    %c0 = arith.constant 0 : index
    %c0_0 = arith.constant 0 : index
    %c0_1 = arith.constant 0 : index
    %1 = vector.load %arg5[%c0, %c0_0, %c0_1] : memref<2x16x64xf32, #tpu.memory_space<vmem>>, vector<2x16x64xf32>
    tpu.vector_store %arg5[%c0, %c0_0, %c0_1], %0 {strides = array<i32>} : memref<2x16x64xf32, #tpu.memory_space<vmem>>, vector<2x16x64xf32>,
    %c0_2 = arith.constant 0 : index
    %c0_3 = arith.constant 0 : index
    %2 = vector.load %arg1[%c0_2, %c0_3] : memref<16x256xbf16, #tpu.memory_space<vmem>>, vector<16x256xbf16>
    %c0_4 = arith.constant 0 : index
    %c0_5 = arith.constant 0 : index
    %3 = vector.load %arg2[%c0_4, %c0_5] : memref<256x256xbf16, #tpu.memory_space<vmem>>, vector<256x64xbf16>
    %cst_6 = arith.constant dense<0.000000e+00> : vector<16x64xf32>
    %4 = tpu.matmul %2, %3, %cst_6 {dimension_numbers = #tpu.dot_dimension_numbers<[1], [0], [0], [1], [0, 0, 1, 1], [], []>} : vector<16x256xbf16>, vector<256x64xbf16>, vector<16x64xf32> -> vector<16x64xf32>
    %c0_7 = arith.constant 0 : index
    %c0_8 = arith.constant 0 : index
    %c0_9 = arith.constant 0 : index
    %5 = vector.load %arg5[%c0_7, %c0_8, %c0_9] : memref<2x16x64xf32, #tpu.memory_space<vmem>>, vector<2x8x64xf32>
    %6 = vector.shape_cast %4 : vector<16x64xf32> to vector<2x8x64xf32>
    %7 = arith.addf %5, %6 : vector<2x8x64xf32>
    %c0_10 = arith.constant 0 : index
    %c0_11 = arith.constant 0 : index
    %c0_12 = arith.constant 0 : index
    %8 = vector.load %arg5[%c0_10, %c0_11, %c0_12] : memref<2x16x64xf32, #tpu.memory_space<vmem>>, vector<2x8x64xf32>
    tpu.vector_store %arg5[%c0_10, %c0_11, %c0_12], %7 {strides = array<i32>} : memref<2x16x64xf32, #tpu.memory_space<vmem>>, vector<2x8x64xf32>,
    %c0_13 = arith.constant 0 : index
    %c64 = arith.constant 64 : index
    %9 = vector.load %arg2[%c0_13, %c64] : memref<256x256xbf16, #tpu.memory_space<vmem>>, vector<256x64xbf16>
    %cst_14 = arith.constant dense<0.000000e+00> : vector<16x64xf32>
    %10 = tpu.matmul %2, %9, %cst_14 {dimension_numbers = #tpu.dot_dimension_numbers<[1], [0], [0], [1], [0, 0, 1, 1], [], []>} : vector<16x256xbf16>, vector<256x64xbf16>, vector<16x64xf32> -> vector<16x64xf32>
    %c0_15 = arith.constant 0 : index
    %c1 = arith.constant 1 : index
    %c0_16 = arith.constant 0 : index
    %11 = vector.load %arg5[%c0_15, %c1, %c0_16] : memref<2x16x64xf32, #tpu.memory_space<vmem>>, vector<2x8x64xf32>
    %12 = vector.shape_cast %10 : vector<16x64xf32> to vector<2x8x64xf32>
    %13 = arith.addf %11, %12 : vector<2x8x64xf32>
    %c0_17 = arith.constant 0 : index
    %c1_18 = arith.constant 1 : index
    %c0_19 = arith.constant 0 : index
    %14 = vector.load %arg5[%c0_17, %c1_18, %c0_19] : memref<2x16x64xf32, #tpu.memory_space<vmem>>, vector<2x8x64xf32>
    tpu.vector_store %arg5[%c0_17, %c1_18, %c0_19], %13 {strides = array<i32>} : memref<2x16x64xf32, #tpu.memory_space<vmem>>, vector<2x8x64xf32>,
    %c0_20 = arith.constant 0 : index
    %c128 = arith.constant 128 : index
    %15 = vector.load %arg2[%c0_20, %c128] : memref<256x256xbf16, #tpu.memory_space<vmem>>, vector<256x64xbf16>
    %cst_21 = arith.constant dense<0.000000e+00> : vector<16x64xf32>
    %16 = tpu.matmul %2, %15, %cst_21 {dimension_numbers = #tpu.dot_dimension_numbers<[1], [0], [0], [1], [0, 0, 1, 1], [], []>} : vector<16x256xbf16>, vector<256x64xbf16>, vector<16x64xf32> -> vector<16x64xf32>
    %c0_22 = arith.constant 0 : index
    %c2 = arith.constant 2 : index
    %c0_23 = arith.constant 0 : index
    %17 = vector.load %arg5[%c0_22, %c2, %c0_23] : memref<2x16x64xf32, #tpu.memory_space<vmem>>, vector<2x8x64xf32>
    %18 = vector.shape_cast %16 : vector<16x64xf32> to vector<2x8x64xf32>
    %19 = arith.addf %17, %18 : vector<2x8x64xf32>
    %c0_24 = arith.constant 0 : index
    %c2_25 = arith.constant 2 : index
    %c0_26 = arith.constant 0 : index
    %20 = vector.load %arg5[%c0_24, %c2_25, %c0_26] : memref<2x16x64xf32, #tpu.memory_space<vmem>>, vector<2x8x64xf32>
    tpu.vector_store %arg5[%c0_24, %c2_25, %c0_26], %19 {strides = array<i32>} : memref<2x16x64xf32, #tpu.memory_space<vmem>>, vector<2x8x64xf32>,
    %c0_27 = arith.constant 0 : index
    %c192 = arith.constant 192 : index
    %21 = vector.load %arg2[%c0_27, %c192] : memref<256x256xbf16, #tpu.memory_space<vmem>>, vector<256x64xbf16>
    %cst_28 = arith.constant dense<0.000000e+00> : vector<16x64xf32>
    %22 = tpu.matmul %2, %21, %cst_28 {dimension_numbers = #tpu.dot_dimension_numbers<[1], [0], [0], [1], [0, 0, 1, 1], [], []>} : vector<16x256xbf16>, vector<256x64xbf16>, vector<16x64xf32> -> vector<16x64xf32>
    %c0_29 = arith.constant 0 : index
    %c3 = arith.constant 3 : index
    %c0_30 = arith.constant 0 : index
    %23 = vector.load %arg5[%c0_29, %c3, %c0_30] : memref<2x16x64xf32, #tpu.memory_space<vmem>>, vector<2x8x64xf32>
    %24 = vector.shape_cast %22 : vector<16x64xf32> to vector<2x8x64xf32>
    %25 = arith.addf %23, %24 : vector<2x8x64xf32>
    %c0_31 = arith.constant 0 : index
    %c3_32 = arith.constant 3 : index
    %c0_33 = arith.constant 0 : index
    %26 = vector.load %arg5[%c0_31, %c3_32, %c0_33] : memref<2x16x64xf32, #tpu.memory_space<vmem>>, vector<2x8x64xf32>
    tpu.vector_store %arg5[%c0_31, %c3_32, %c0_33], %25 {strides = array<i32>} : memref<2x16x64xf32, #tpu.memory_space<vmem>>, vector<2x8x64xf32>,
    %c0_34 = arith.constant 0 : index
    %c2_35 = arith.constant 2 : index
    %c0_36 = arith.constant 0 : index
    %27 = vector.load %arg5[%c0_34, %c2_35, %c0_36] : memref<2x16x64xf32, #tpu.memory_space<vmem>>, vector<2x7x64xf32>
    %c0_37 = arith.constant 0 : index
    %c0_38 = arith.constant 0 : index
    %28 = vector.load %arg3[%c0_37, %c0_38] : memref<7x64xf32, #tpu.memory_space<vmem>>, vector<7x64xf32>
    %29 = vector.shape_cast %28 : vector<7x64xf32> to vector<1x7x64xf32>
    %30 = vector.broadcast %29 : vector<1x7x64xf32> to vector<2x7x64xf32>
    %31 = arith.mulf %27, %30 : vector<2x7x64xf32>
    %c0_39 = arith.constant 0 : index
    %c0_40 = arith.constant 0 : index
    %c0_41 = arith.constant 0 : index
    %32 = vector.load %arg4[%c0_39, %c0_40, %c0_41] : memref<2x7x64xf32, #tpu.memory_space<vmem>>, vector<2x7x64xf32>
    tpu.vector_store %arg4[%c0_39, %c0_40, %c0_41], %31 {strides = array<i32>} : memref<2x7x64xf32, #tpu.memory_space<vmem>>, vector<2x7x64xf32>,
    return
  }
  func.func @transform_0(%arg0: i32) -> (i32, i32) {
    %c0_i32 = arith.constant 0 : i32
    %c0_i32_0 = arith.constant 0 : i32
    return %arg0, %c0_i32 : i32, i32
  }
  func.func @transform_1(%arg0: i32) -> (i32, i32) {
    %c0_i32 = arith.constant 0 : i32
    %c0_i32_0 = arith.constant 0 : i32
    %c0_i32_1 = arith.constant 0 : i32
    return %c0_i32, %c0_i32_0 : i32, i32
  }
  func.func @transform_2(%arg0: i32) -> (i32, i32) {
    %c0_i32 = arith.constant 0 : i32
    %c0_i32_0 = arith.constant 0 : i32
    %c0_i32_1 = arith.constant 0 : i32
    return %c0_i32, %c0_i32_0 : i32, i32
  }
  func.func @transform_3(%arg0: i32) -> (i32, i32, i32) {
    %c0_i32 = arith.constant 0 : i32
    %c0_i32_0 = arith.constant 0 : i32
    %c0_i32_1 = arith.constant 0 : i32
    return %arg0, %c0_i32, %c0_i32_0 : i32, i32, i32
  }
}

</mosaic_0001>

<llo_original>
// kernel: tpu_custom_call.1
$region0: #{tpu_custom_call.1}
  #allocation0 [shape = 'u32[]', space=smem, size = 0x4, offset = 0x4, fixed_abs, tag = 'smem constant byte address 0x4 - core index']
  #allocation1 [shape = 'u32[144,128]{1,0:T(1,128)}', space=vmem, size = 0x12000, scoped, tag = 'internal scratch']
  #allocation2 [shape = 'f32[2,16,64]{2,1,0:T(8,128)}', space=vmem, size = 0x4000, scoped, tag = 'scratch operand']
  %s0 = inlined_call_operand.hbm [shape: bf16[32,256], index: 0, kind: input, shape index: {}]
  %s1 = inlined_call_operand.hbm [shape: bf16[256,256], index: 1, kind: input, shape index: {}]
  %s2 = inlined_call_operand.hbm [shape: f32[7,64], index: 2, kind: input, shape index: {}]
  %s3 = inlined_call_operand.vmem [shape: f32[4,7,64], index: 3, kind: output, shape index: {}]
  %s4 = sld [smem:[#allocation0]]
  $region57: #{tpu_custom_call.1} parent=0
    _
  %s6 = ssub.s32 1, %s4
  %s7 = scalar_select 0, %s6, %s4
  $region1: #{tpu_custom_call.1} parent=0
    #allocation3 [shape = 'u8[16384]{0}', space=vmem, size = 0x4000, scoped, tag = 'input window, operand 0']
    #allocation4 [shape = 's32[2]{0}', space=sflag, size = 0x8, scoped, tag = 'scoped memory for tpu_custom_call.1']
    #allocation5 [shape = 'u8[131072]{0}', space=vmem, size = 0x20000, scoped, tag = 'input window, operand 1, single buffered']
    #allocation6 [shape = 's32[1]{0}', space=sflag, size = 0x4, scoped, tag = 'scoped memory for tpu_custom_call.1']
    #allocation7 [shape = 'u8[4096]{0}', space=vmem, size = 0x1000, scoped, tag = 'input window, operand 2, single buffered']
    %8 = vsyncpa [#allocation4], 0
    %s9 = scalar_lea.sflag [#allocation4], 1
    %10 = vsyncpa %s9, 0
    %11 = vsyncpa [#allocation6], 0
    loop: start=0, step=1, limit=4
    $region2: #{tpu_custom_call.1} parent=1 // loop_pre_header
      _
    $region3: #{tpu_custom_call.1} parent=1 // loop_header
      %s13 = sphi 0, %s17
      %p14 = scmp.ge.s32.totalorder %s13, 4
      %s23 = sphi 0, %s25
      %s26 = sphi 0, %s23
      %s27 = sphi 0, %s26
      %s43 = sphi 0, %s27
      %s47 = sphi 0, %s47
      %s49 = sphi 0, %s47
      %s50 = sphi 0, %s49
      %s64 = sphi 0, %s50
      %s68 = sphi 0, %s68
      %s70 = sphi 0, %s68
      %s71 = sphi 0, %s70
      %s85 = sphi 0, %s71
      %s91 = sphi 0, %s93
      %s94 = sphi 0, %s91
      %s95 = sphi 0, %s94
      %s111 = sphi 0, %s95
    $region4: #{tpu_custom_call.1} parent=1 // loop_header_branch
      %16 = sbr.rel (%p14) target = $region8
    $region5: #{tpu_custom_call.1} parent=1 // loop_body
      %s18 = ssub.s32 %s13, 1
      %s19 = ssub.s32 %s13, 2
      %s20 = sadd.s32 %s13, 1
      %s21 = ssub.s32 %s13, %s20
      %p22 = scmp.eq.s32.totalorder %s21, 0
      %s24 = sadd.s32 %s23, 1
      %s25 = scalar_select %p22, %s23, %s24
      %p28 = pneg %p22
      %p29 = scmp.eq.s32.totalorder %s13, 1
      %p30 = por %p28, %p29
      %p31 = scmp.ne.s32.totalorder %s23, %s26
      %p32 = scmp.eq.s32.totalorder %s13, 0
      %p33 = por %p31, %p32
      %p34 = scmp.ne.s32.totalorder %s23, %s26
      %p35 = scmp.eq.s32.totalorder %s18, 1
      %p36 = por %p34, %p35
      %p37 = scmp.ne.s32.totalorder %s26, %s27
      %p38 = scmp.eq.s32.totalorder %s18, 0
      %p39 = por %p37, %p38
      %p40 = scmp.ne.s32.totalorder %s26, %s27
      %p41 = scmp.eq.s32.totalorder %s19, 1
      %p42 = por %p40, %p41
      %p44 = scmp.ne.s32.totalorder %s27, %s43
      %p45 = scmp.eq.s32.totalorder %s19, 0
      %p46 = por %p44, %p45
      %s48 = sadd.s32 %s47, 1
      %p51 = scmp.eq.s32.totalorder %s13, 1
      %p52 = scmp.ne.s32.totalorder %s47, %s49
      %p53 = scmp.eq.s32.totalorder %s13, 0
      %p54 = por %p52, %p53
      %p55 = scmp.ne.s32.totalorder %s47, %s49
      %p56 = scmp.eq.s32.totalorder %s18, 1
      %p57 = por %p55, %p56
      %p58 = scmp.ne.s32.totalorder %s49, %s50
      %p59 = scmp.eq.s32.totalorder %s18, 0
      %p60 = por %p58, %p59
      %p61 = scmp.ne.s32.totalorder %s49, %s50
      %p62 = scmp.eq.s32.totalorder %s19, 1
      %p63 = por %p61, %p62
      %p65 = scmp.ne.s32.totalorder %s50, %s64
      %p66 = scmp.eq.s32.totalorder %s19, 0
      %p67 = por %p65, %p66
      %s69 = sadd.s32 %s68, 1
      %p72 = scmp.eq.s32.totalorder %s13, 1
      %p73 = scmp.ne.s32.totalorder %s68, %s70
      %p74 = scmp.eq.s32.totalorder %s13, 0
      %p75 = por %p73, %p74
      %p76 = scmp.ne.s32.totalorder %s68, %s70
      %p77 = scmp.eq.s32.totalorder %s18, 1
      %p78 = por %p76, %p77
      %p79 = scmp.ne.s32.totalorder %s70, %s71
      %p80 = scmp.eq.s32.totalorder %s18, 0
      %p81 = por %p79, %p80
      %p82 = scmp.ne.s32.totalorder %s70, %s71
      %p83 = scmp.eq.s32.totalorder %s19, 1
      %p84 = por %p82, %p83
      %p86 = scmp.ne.s32.totalorder %s71, %s85
      %p87 = scmp.eq.s32.totalorder %s19, 0
      %p88 = por %p86, %p87
      %s89 = ssub.s32 %s13, %s20
      %p90 = scmp.eq.s32.totalorder %s89, 0
      %s92 = sadd.s32 %s91, 1
      %s93 = scalar_select %p90, %s91, %s92
      %p96 = pneg %p90
      %p97 = scmp.eq.s32.totalorder %s13, 1
      %p98 = por %p96, %p97
      %p99 = scmp.ne.s32.totalorder %s91, %s94
      %p100 = scmp.eq.s32.totalorder %s13, 0
      %p101 = por %p99, %p100
      %p102 = scmp.ne.s32.totalorder %s91, %s94
      %p103 = scmp.eq.s32.totalorder %s18, 1
      %p104 = por %p102, %p103
      %p105 = scmp.ne.s32.totalorder %s94, %s95
      %p106 = scmp.eq.s32.totalorder %s18, 0
      %p107 = por %p105, %p106
      %p108 = scmp.ne.s32.totalorder %s94, %s95
      %p109 = scmp.eq.s32.totalorder %s19, 1
      %p110 = por %p108, %p109
      %p112 = scmp.ne.s32.totalorder %s95, %s111
      %p113 = scmp.eq.s32.totalorder %s19, 0
      %p114 = por %p112, %p113
      %p115 = scmp.le.s32.totalorder 1, %s13
      %p116 = scmp.lt.s32.totalorder %s13, 3
      %p117 = pnand %p115, %p116
      %p118 = pneg %p117
      // Predicated region
      $region9: #{tpu_custom_call.1} parent=5 // pred_check
        _
      $region10: #{tpu_custom_call.1} parent=5 // pred_check_branch
        %120 = sbr.rel (%p117) target = $region12
      $region11: #{tpu_custom_call.1} parent=5 // pred_region
        %s121 = ssub.s32 %s13, 1
        // Predicated region
        $region13: #{tpu_custom_call.1} parent=11 // pred_check
          %p122 = pneg %p60
        $region14: #{tpu_custom_call.1} parent=11 // pred_check_branch
          %124 = sbr.rel (%p122) target = $region16
        $region15: #{tpu_custom_call.1} parent=11 // pred_region
          %s126 = ssub.s32 4096, 4096
          %127 = vsyncadd [#allocation6], %s126
          %s128 = sshll.u32 [#allocation5], 4
          %s129 = int_to_ptr.vmem [resolvable:$true] %s128
          %134 = dma.hbm_to_vmem [thread:$0]  %s1, 4096, %s129, [#allocation6], 128, 128, 8
        $region16: #{tpu_custom_call.1} parent=11 // pred_fallthru
          _
        // Predicated region
        $region17: #{tpu_custom_call.1} parent=11 // pred_check
          %p135 = pneg %p81
        $region18: #{tpu_custom_call.1} parent=11 // pred_check_branch
          %137 = sbr.rel (%p135) target = $region20
        $region19: #{tpu_custom_call.1} parent=11 // pred_region
          %s139 = ssub.s32 128, 128
          %140 = vsyncadd [#allocation6], %s139
          %s142 = sshll.u32 [#allocation7], 4
          %s143 = int_to_ptr.vmem [resolvable:$true] %s142
          %145 = dma.hbm_to_vmem [thread:$0]  %s2, 128, %s143, [#allocation6]
        $region20: #{tpu_custom_call.1} parent=11 // pred_fallthru
          _
      $region12: #{tpu_custom_call.1} parent=5 // pred_fallthru
        _
      %p146 = scmp.lt.s32.totalorder %s13, 2
      // Predicated region
      $region21: #{tpu_custom_call.1} parent=5 // pred_check
        %p147 = pneg %p146
      $region22: #{tpu_custom_call.1} parent=5 // pred_check_branch
        %149 = sbr.rel (%p147) target = $region24
      $region23: #{tpu_custom_call.1} parent=5 // pred_region
        // Predicated region
        $region25: #{tpu_custom_call.1} parent=23 // pred_check
          %p150 = pneg %p33
        $region26: #{tpu_custom_call.1} parent=23 // pred_check_branch
          %152 = sbr.rel (%p150) target = $region28
        $region27: #{tpu_custom_call.1} parent=23 // pred_region
          %s153 = sand.u32 %s23, 1
          %s154 = scalar_lea.sflag [#allocation4], %s153
          %s155 = sand.u32 %s23, 1
          %s156 = smul.addr %s155, 16
          %s157 = scalar_lea.vmem [#allocation3], %s156
          %s158 = smul.u32 2, %s13
          %s160 = ssub.s32 256, 256
          %161 = vsyncadd %s154, %s160
          %s162 = smul.addr %s158, 2
          %s163 = smul.addr %s162, 64
          %s164 = scalar_lea.hbm %s0, %s163
          %s165 = sshll.u32 %s157, 4
          %s166 = int_to_ptr.vmem [resolvable:$true] %s165
          %171 = dma.hbm_to_vmem [thread:$0]  %s164, 256, %s166, %s154, 128, 128, 8
        $region28: #{tpu_custom_call.1} parent=23 // pred_fallthru
          _
      $region24: #{tpu_custom_call.1} parent=5 // pred_fallthru
        _
      %p172 = scmp.le.s32.totalorder 1, %s13
      %p173 = scmp.lt.s32.totalorder %s13, 3
      %p174 = pnand %p172, %p173
      %p175 = pneg %p174
      // Predicated region
      $region29: #{tpu_custom_call.1} parent=5 // pred_check
        _
      $region30: #{tpu_custom_call.1} parent=5 // pred_check_branch
        %177 = sbr.rel (%p174) target = $region32
      $region31: #{tpu_custom_call.1} parent=5 // pred_region
        %s178 = ssub.s32 %s13, 1
        %s179 = sand.u32 %s26, 1
        %s180 = scalar_lea.sflag [#allocation4], %s179
        %s181 = sand.u32 %s26, 1
        %s182 = smul.addr %s181, 16
        %s183 = scalar_lea.vmem [#allocation3], %s182
        // Predicated region
        $region33: #{tpu_custom_call.1} parent=31 // pred_check
          %p184 = pneg %p39
        $region34: #{tpu_custom_call.1} parent=31 // pred_check_branch
          %186 = sbr.rel (%p184) target = $region36
        $region35: #{tpu_custom_call.1} parent=31 // pred_region
          %187 = dma.done %s180, 256
        $region36: #{tpu_custom_call.1} parent=31 // pred_fallthru
          _
        // Predicated region
        $region37: #{tpu_custom_call.1} parent=31 // pred_check
          %p188 = pneg %p60
        $region38: #{tpu_custom_call.1} parent=31 // pred_check_branch
          %190 = sbr.rel (%p188) target = $region40
        $region39: #{tpu_custom_call.1} parent=31 // pred_region
          %191 = dma.done [#allocation6], 4096
        $region40: #{tpu_custom_call.1} parent=31 // pred_fallthru
          _
        // Predicated region
        $region41: #{tpu_custom_call.1} parent=31 // pred_check
          %p192 = pneg %p81
        $region42: #{tpu_custom_call.1} parent=31 // pred_check_branch
          %194 = sbr.rel (%p192) target = $region44
        $region43: #{tpu_custom_call.1} parent=31 // pred_region
          %195 = dma.done [#allocation6], 128
        $region44: #{tpu_custom_call.1} parent=31 // pred_fallthru
          _
        %s196 = sand.u32 %s26, 1
        %s197 = scalar_lea.sflag [#allocation4], %s196
        %s198 = sand.u32 %s26, 1
        %s199 = smul.addr %s198, 16
        %s200 = scalar_lea.vmem [#allocation3], %s199
        %p201 = pneg %p39
        %p202 = pneg %p36
        %p203 = pneg %p60
        %p204 = pneg %p57
        %p205 = pneg %p81
        %p206 = pneg %p78
        %p207 = pneg %p107
        %p208 = pneg %p104
        %s209 = smul.u32 2, %s18
        %p210 = scmp.lt.s32.totalorder %s209, 3
        %s211 = scalar_select %p210, %s209, 3
        %s212 = smul.addr %s211, 8
        %s213 = scalar_lea.vmem %s3, %s212
        %s214 = smul.u32 2, %s18
        %s215 = smul.u32 2, %s18
        %p216 = scmp.lt.s32.totalorder %s215, 3
        %s217 = scalar_select %p216, %s215, 3
        %s218 = smul.addr %s217, 8
        %s219 = scalar_lea.vmem %s3, %s218
        %s220 = smul.u32 2, %s18
        %vm222 = vcmask 523264
        %223 = vst.msk [vmem:[#allocation2] sm:$0xff] %vm222, 0.0
        %224 = vst.msk [vmem:[#allocation2 + $0x8] sm:$0xff] %vm222, 0.0
        %225 = vst.msk [vmem:[#allocation2 + $0x10] sm:$0xff] %vm222, 0.0
        %226 = vst.msk [vmem:[#allocation2 + $0x18] sm:$0xff] %vm222, 0.0
        %v227 = vld [vmem:[%s183] sm:$0xff]
        %v228 = vld [vmem:[%s183 + $0x8] sm:$0xff]
        %v229 = vld [vmem:[#allocation5] sm:$0xf]
        %v230 = vld [vmem:[#allocation5 + $0x8] sm:$0xf]
        %v231 = vld [vmem:[#allocation5 + $0x10] sm:$0xf]
        %v232 = vld [vmem:[#allocation5 + $0x18] sm:$0xf]
        %v233 = vld [vmem:[#allocation5 + $0x20] sm:$0xf]
        %v234 = vld [vmem:[#allocation5 + $0x28] sm:$0xf]
        %v235 = vld [vmem:[#allocation5 + $0x30] sm:$0xf]
        %v236 = vld [vmem:[#allocation5 + $0x38] sm:$0xf]
        %v237 = vld [vmem:[#allocation5 + $0x40] sm:$0xf]
        %v238 = vld [vmem:[#allocation5 + $0x48] sm:$0xf]
        %v239 = vld [vmem:[#allocation5 + $0x50] sm:$0xf]
        %v240 = vld [vmem:[#allocation5 + $0x58] sm:$0xf]
        %v241 = vld [vmem:[#allocation5 + $0x60] sm:$0xf]
        %v242 = vld [vmem:[#allocation5 + $0x68] sm:$0xf]
        %v243 = vld [vmem:[#allocation5 + $0x70] sm:$0xf]
        %v244 = vld [vmem:[#allocation5 + $0x78] sm:$0xf]
        %v245 = vld [vmem:[#allocation5 + $0x80] sm:$0xf]
        %v246 = vld [vmem:[#allocation5 + $0x88] sm:$0xf]
        %v247 = vld [vmem:[#allocation5 + $0x90] sm:$0xf]
        %v248 = vld [vmem:[#allocation5 + $0x98] sm:$0xf]
        %v249 = vld [vmem:[#allocation5 + $0xa0] sm:$0xf]
        %v250 = vld [vmem:[#allocation5 + $0xa8] sm:$0xf]
        %v251 = vld [vmem:[#allocation5 + $0xb0] sm:$0xf]
        %v252 = vld [vmem:[#allocation5 + $0xb8] sm:$0xf]
        %v253 = vld [vmem:[#allocation5 + $0xc0] sm:$0xf]
        %v254 = vld [vmem:[#allocation5 + $0xc8] sm:$0xf]
        %v255 = vld [vmem:[#allocation5 + $0xd0] sm:$0xf]
        %v256 = vld [vmem:[#allocation5 + $0xd8] sm:$0xf]
        %v257 = vld [vmem:[#allocation5 + $0xe0] sm:$0xf]
        %v258 = vld [vmem:[#allocation5 + $0xe8] sm:$0xf]
        %v259 = vld [vmem:[#allocation5 + $0xf0] sm:$0xf]
        %v260 = vld [vmem:[#allocation5 + $0xf8] sm:$0xf]
        %v263 = vunpack.c.l.b16 %v227
        %v264 = vunpack.c.h.b16 %v227
        %v265 = vunpack.c.l.b16 %v228
        %v266 = vunpack.c.h.b16 %v228
        %v267 = vpack.c.b16 %v265, %v263
        %v268 = vpack.c.b16 %v266, %v264
        %v303 = vunpack.c.l.b16 %v229
        %v304 = vunpack.c.l.b16 %v230
        %v305 = vunpack.c.l.b16 %v231
        %v306 = vunpack.c.l.b16 %v232
        %v307 = vunpack.c.l.b16 %v233
        %v308 = vunpack.c.l.b16 %v234
        %v309 = vunpack.c.l.b16 %v235
        %v310 = vunpack.c.l.b16 %v236
        %v311 = vunpack.c.l.b16 %v237
        %v312 = vunpack.c.l.b16 %v238
        %v313 = vunpack.c.l.b16 %v239
        %v314 = vunpack.c.l.b16 %v240
        %v315 = vunpack.c.l.b16 %v241
        %v316 = vunpack.c.l.b16 %v242
        %v317 = vunpack.c.l.b16 %v243
        %v318 = vunpack.c.l.b16 %v244
        %v319 = vunpack.c.l.b16 %v245
        %v320 = vunpack.c.l.b16 %v246
        %v321 = vunpack.c.l.b16 %v247
        %v322 = vunpack.c.l.b16 %v248
        %v323 = vunpack.c.l.b16 %v249
        %v324 = vunpack.c.l.b16 %v250
        %v325 = vunpack.c.l.b16 %v251
        %v326 = vunpack.c.l.b16 %v252
        %v327 = vunpack.c.l.b16 %v253
        %v328 = vunpack.c.l.b16 %v254
        %v329 = vunpack.c.l.b16 %v255
        %v330 = vunpack.c.l.b16 %v256
        %v331 = vunpack.c.l.b16 %v257
        %v332 = vunpack.c.l.b16 %v258
        %v333 = vunpack.c.l.b16 %v259
        %v334 = vunpack.c.l.b16 %v260
        %v335 = vpack.c.b16 %v304, %v303
        %v336 = vpack.c.b16 %v306, %v305
        %v337 = vpack.c.b16 %v308, %v307
        %v338 = vpack.c.b16 %v310, %v309
        %v339 = vpack.c.b16 %v312, %v311
        %v340 = vpack.c.b16 %v314, %v313
        %v341 = vpack.c.b16 %v316, %v315
        %v342 = vpack.c.b16 %v318, %v317
        %v343 = vpack.c.b16 %v320, %v319
        %v344 = vpack.c.b16 %v322, %v321
        %v345 = vpack.c.b16 %v324, %v323
        %v346 = vpack.c.b16 %v326, %v325
        %v347 = vpack.c.b16 %v328, %v327
        %v348 = vpack.c.b16 %v330, %v329
        %v349 = vpack.c.b16 %v332, %v331
        %v350 = vpack.c.b16 %v334, %v333
        %367 = vmatprep.subr.bf16.mxu0 0
        %368 = vmatpush1.bf16.msra.mxu0 %v335
        %369 = vmatprep.subr.bf16.mxu0 0
        %370 = vmatpush1.bf16.msra.mxu0 %v336
        %371 = vmatprep.subr.bf16.mxu0 0
        %372 = vmatpush1.bf16.msra.mxu0 %v337
        %373 = vmatprep.subr.bf16.mxu0 0
        %374 = vmatpush1.bf16.msra.mxu0 %v338
        %375 = vmatprep.subr.bf16.mxu0 0
        %376 = vmatpush1.bf16.msra.mxu0 %v339
        %377 = vmatprep.subr.bf16.mxu0 0
        %378 = vmatpush1.bf16.msra.mxu0 %v340
        %379 = vmatprep.subr.bf16.mxu0 0
        %380 = vmatpush1.bf16.msra.mxu0 %v341
        %381 = vmatprep.subr.bf16.mxu0 0
        %382 = vmatpush1.bf16.msra.mxu0 %v342
        %383 = vmatprep.subr.bf16.mxu0 0
        %384 = vmatpush1.bf16.msra.mxu0 %v343
        %385 = vmatprep.subr.bf16.mxu0 0
        %386 = vmatpush1.bf16.msra.mxu0 %v344
        %387 = vmatprep.subr.bf16.mxu0 0
        %388 = vmatpush1.bf16.msra.mxu0 %v345
        %389 = vmatprep.subr.bf16.mxu0 0
        %390 = vmatpush1.bf16.msra.mxu0 %v346
        %391 = vmatprep.subr.bf16.mxu0 0
        %392 = vmatpush1.bf16.msra.mxu0 %v347
        %393 = vmatprep.subr.bf16.mxu0 0
        %394 = vmatpush1.bf16.msra.mxu0 %v348
        %395 = vmatprep.subr.bf16.mxu0 0
        %396 = vmatpush1.bf16.msra.mxu0 %v349
        %397 = vmatprep.subr.bf16.mxu0 0
        %398 = vmatpush1.bf16.msra.mxu0 %v350
        %399 = vmatprep.mubr.bf16.mxu0 %v268
        %400 = vmatmul.mubr.bf16.gmra.mrb[0].mxu0 %v267
        %v401 = vpop.f32.mrb[0].mxu0
        %v402 = vadd.f32 0.0, %v401
        %v403 = vpop.f32.mrb[0].mxu0
        %v404 = vpop.f32.mrb[0].mxu0
        %v405 = vadd.f32 0.0, %v404
        %v406 = vpop.f32.mrb[0].mxu0
        %407 = vdwg.mxu0
        %v408 = vld [vmem:[#allocation2] sm:$0xff]
        %v409 = vld [vmem:[#allocation2 + $0x10] sm:$0xff]
        %v410 = vadd.f32 %v408, %v402
        %v411 = vadd.f32 %v409, %v405
        %412 = vst.msk [vmem:[#allocation2] sm:$0xff] %vm222, %v410
        %413 = vst.msk [vmem:[#allocation2 + $0x10] sm:$0xff] %vm222, %v411
        %v414 = vld [vmem:[#allocation5] sm:$0xf]
        %v415 = vld [vmem:[#allocation5 + $0x8] sm:$0xf]
        %v416 = vld [vmem:[#allocation5 + $0x10] sm:$0xf]
        %v417 = vld [vmem:[#allocation5 + $0x18] sm:$0xf]
        %v418 = vld [vmem:[#allocation5 + $0x20] sm:$0xf]
        %v419 = vld [vmem:[#allocation5 + $0x28] sm:$0xf]
        %v420 = vld [vmem:[#allocation5 + $0x30] sm:$0xf]
        %v421 = vld [vmem:[#allocation5 + $0x38] sm:$0xf]
        %v422 = vld [vmem:[#allocation5 + $0x40] sm:$0xf]
        %v423 = vld [vmem:[#allocation5 + $0x48] sm:$0xf]
        %v424 = vld [vmem:[#allocation5 + $0x50] sm:$0xf]
        %v425 = vld [vmem:[#allocation5 + $0x58] sm:$0xf]
        %v426 = vld [vmem:[#allocation5 + $0x60] sm:$0xf]
        %v427 = vld [vmem:[#allocation5 + $0x68] sm:$0xf]
        %v428 = vld [vmem:[#allocation5 + $0x70] sm:$0xf]
        %v429 = vld [vmem:[#allocation5 + $0x78] sm:$0xf]
        %v430 = vld [vmem:[#allocation5 + $0x80] sm:$0xf]
        %v431 = vld [vmem:[#allocation5 + $0x88] sm:$0xf]
        %v432 = vld [vmem:[#allocation5 + $0x90] sm:$0xf]
        %v433 = vld [vmem:[#allocation5 + $0x98] sm:$0xf]
        %v434 = vld [vmem:[#allocation5 + $0xa0] sm:$0xf]
        %v435 = vld [vmem:[#allocation5 + $0xa8] sm:$0xf]
        %v436 = vld [vmem:[#allocation5 + $0xb0] sm:$0xf]
        %v437 = vld [vmem:[#allocation5 + $0xb8] sm:$0xf]
        %v438 = vld [vmem:[#allocation5 + $0xc0] sm:$0xf]
        %v439 = vld [vmem:[#allocation5 + $0xc8] sm:$0xf]
        %v440 = vld [vmem:[#allocation5 + $0xd0] sm:$0xf]
        %v441 = vld [vmem:[#allocation5 + $0xd8] sm:$0xf]
        %v442 = vld [vmem:[#allocation5 + $0xe0] sm:$0xf]
        %v443 = vld [vmem:[#allocation5 + $0xe8] sm:$0xf]
        %v444 = vld [vmem:[#allocation5 + $0xf0] sm:$0xf]
        %v445 = vld [vmem:[#allocation5 + $0xf8] sm:$0xf]
        %v478 = vunpack.c.l.b16 %v414
        %v479 = vunpack.c.l.b16 %v415
        %v480 = vunpack.c.l.b16 %v416
        %v481 = vunpack.c.l.b16 %v417
        %v482 = vunpack.c.l.b16 %v418
        %v483 = vunpack.c.l.b16 %v419
        %v484 = vunpack.c.l.b16 %v420
        %v485 = vunpack.c.l.b16 %v421
        %v486 = vunpack.c.l.b16 %v422
        %v487 = vunpack.c.l.b16 %v423
        %v488 = vunpack.c.l.b16 %v424
        %v489 = vunpack.c.l.b16 %v425
        %v490 = vunpack.c.l.b16 %v426
        %v491 = vunpack.c.l.b16 %v427
        %v492 = vunpack.c.l.b16 %v428
        %v493 = vunpack.c.l.b16 %v429
        %v494 = vunpack.c.l.b16 %v430
        %v495 = vunpack.c.l.b16 %v431
        %v496 = vunpack.c.l.b16 %v432
        %v497 = vunpack.c.l.b16 %v433
        %v498 = vunpack.c.l.b16 %v434
        %v499 = vunpack.c.l.b16 %v435
        %v500 = vunpack.c.l.b16 %v436
        %v501 = vunpack.c.l.b16 %v437
        %v502 = vunpack.c.l.b16 %v438
        %v503 = vunpack.c.l.b16 %v439
        %v504 = vunpack.c.l.b16 %v440
        %v505 = vunpack.c.l.b16 %v441
        %v506 = vunpack.c.l.b16 %v442
        %v507 = vunpack.c.l.b16 %v443
        %v508 = vunpack.c.l.b16 %v444
        %v509 = vunpack.c.l.b16 %v445
        %v510 = vpack.c.b16 %v479, %v478
        %v511 = vpack.c.b16 %v481, %v480
        %v512 = vpack.c.b16 %v483, %v482
        %v513 = vpack.c.b16 %v485, %v484
        %v514 = vpack.c.b16 %v487, %v486
        %v515 = vpack.c.b16 %v489, %v488
        %v516 = vpack.c.b16 %v491, %v490
        %v517 = vpack.c.b16 %v493, %v492
        %v518 = vpack.c.b16 %v495, %v494
        %v519 = vpack.c.b16 %v497, %v496
        %v520 = vpack.c.b16 %v499, %v498
        %v521 = vpack.c.b16 %v501, %v500
        %v522 = vpack.c.b16 %v503, %v502
        %v523 = vpack.c.b16 %v505, %v504
        %v524 = vpack.c.b16 %v507, %v506
        %v525 = vpack.c.b16 %v509, %v508
        %526 = vrot.lane.b32.xlu0 %v510, 64
        %v527 = vpop.permute.xlu0 %526
        %528 = vrot.lane.b32.xlu0 %v511, 64
        %v529 = vpop.permute.xlu0 %528
        %530 = vrot.lane.b32.xlu0 %v512, 64
        %v531 = vpop.permute.xlu0 %530
        %532 = vrot.lane.b32.xlu0 %v513, 64
        %v533 = vpop.permute.xlu0 %532
        %534 = vrot.lane.b32.xlu0 %v514, 64
        %v535 = vpop.permute.xlu0 %534
        %536 = vrot.lane.b32.xlu0 %v515, 64
        %v537 = vpop.permute.xlu0 %536
        %538 = vrot.lane.b32.xlu0 %v516, 64
        %v539 = vpop.permute.xlu0 %538
        %540 = vrot.lane.b32.xlu0 %v517, 64
        %v541 = vpop.permute.xlu0 %540
        %542 = vrot.lane.b32.xlu0 %v518, 64
        %v543 = vpop.permute.xlu0 %542
        %544 = vrot.lane.b32.xlu0 %v519, 64
        %v545 = vpop.permute.xlu0 %544
        %546 = vrot.lane.b32.xlu0 %v520, 64
        %v547 = vpop.permute.xlu0 %546
        %548 = vrot.lane.b32.xlu0 %v521, 64
        %v549 = vpop.permute.xlu0 %548
        %550 = vrot.lane.b32.xlu0 %v522, 64
        %v551 = vpop.permute.xlu0 %550
        %552 = vrot.lane.b32.xlu0 %v523, 64
        %v553 = vpop.permute.xlu0 %552
        %554 = vrot.lane.b32.xlu0 %v524, 64
        %v555 = vpop.permute.xlu0 %554
        %556 = vrot.lane.b32.xlu0 %v525, 64
        %v557 = vpop.permute.xlu0 %556
        %574 = vmatprep.subr.bf16.mxu0 0
        %575 = vmatpush1.bf16.msra.mxu0 %v527
        %576 = vmatprep.subr.bf16.mxu0 0
        %577 = vmatpush1.bf16.msra.mxu0 %v529
        %578 = vmatprep.subr.bf16.mxu0 0
        %579 = vmatpush1.bf16.msra.mxu0 %v531
        %580 = vmatprep.subr.bf16.mxu0 0
        %581 = vmatpush1.bf16.msra.mxu0 %v533
        %582 = vmatprep.subr.bf16.mxu0 0
        %583 = vmatpush1.bf16.msra.mxu0 %v535
        %584 = vmatprep.subr.bf16.mxu0 0
        %585 = vmatpush1.bf16.msra.mxu0 %v537
        %586 = vmatprep.subr.bf16.mxu0 0
        %587 = vmatpush1.bf16.msra.mxu0 %v539
        %588 = vmatprep.subr.bf16.mxu0 0
        %589 = vmatpush1.bf16.msra.mxu0 %v541
        %590 = vmatprep.subr.bf16.mxu0 0
        %591 = vmatpush1.bf16.msra.mxu0 %v543
        %592 = vmatprep.subr.bf16.mxu0 0
        %593 = vmatpush1.bf16.msra.mxu0 %v545
        %594 = vmatprep.subr.bf16.mxu0 0
        %595 = vmatpush1.bf16.msra.mxu0 %v547
        %596 = vmatprep.subr.bf16.mxu0 0
        %597 = vmatpush1.bf16.msra.mxu0 %v549
        %598 = vmatprep.subr.bf16.mxu0 0
        %599 = vmatpush1.bf16.msra.mxu0 %v551
        %600 = vmatprep.subr.bf16.mxu0 0
        %601 = vmatpush1.bf16.msra.mxu0 %v553
        %602 = vmatprep.subr.bf16.mxu0 0
        %603 = vmatpush1.bf16.msra.mxu0 %v555
        %604 = vmatprep.subr.bf16.mxu0 0
        %605 = vmatpush1.bf16.msra.mxu0 %v557
        %606 = vmatprep.mubr.bf16.mxu0 %v268
        %607 = vmatmul.mubr.bf16.gmra.mrb[0].mxu0 %v267
        %v608 = vpop.f32.mrb[0].mxu0
        %v609 = vadd.f32 0.0, %v608
        %v610 = vpop.f32.mrb[0].mxu0
        %v611 = vpop.f32.mrb[0].mxu0
        %v612 = vadd.f32 0.0, %v611
        %v613 = vpop.f32.mrb[0].mxu0
        %614 = vdwg.mxu0
        %v615 = vld [vmem:[#allocation2 + $0x1] sm:$0xff]
        %v616 = vld [vmem:[#allocation2 + $0x11] sm:$0xff]
        %v617 = vadd.f32 %v615, %v609
        %v618 = vadd.f32 %v616, %v612
        %619 = vst.msk [vmem:[#allocation2 + $0x1] sm:$0xff] %vm222, %v617
        %620 = vst.msk [vmem:[#allocation2 + $0x11] sm:$0xff] %vm222, %v618
        %v621 = vld [vmem:[#allocation5 + $0x4] sm:$0xf]
        %v622 = vld [vmem:[#allocation5 + $0xc] sm:$0xf]
        %v623 = vld [vmem:[#allocation5 + $0x14] sm:$0xf]
        %v624 = vld [vmem:[#allocation5 + $0x1c] sm:$0xf]
        %v625 = vld [vmem:[#allocation5 + $0x24] sm:$0xf]
        %v626 = vld [vmem:[#allocation5 + $0x2c] sm:$0xf]
        %v627 = vld [vmem:[#allocation5 + $0x34] sm:$0xf]
        %v628 = vld [vmem:[#allocation5 + $0x3c] sm:$0xf]
        %v629 = vld [vmem:[#allocation5 + $0x44] sm:$0xf]
        %v630 = vld [vmem:[#allocation5 + $0x4c] sm:$0xf]
        %v631 = vld [vmem:[#allocation5 + $0x54] sm:$0xf]
        %v632 = vld [vmem:[#allocation5 + $0x5c] sm:$0xf]
        %v633 = vld [vmem:[#allocation5 + $0x64] sm:$0xf]
        %v634 = vld [vmem:[#allocation5 + $0x6c] sm:$0xf]
        %v635 = vld [vmem:[#allocation5 + $0x74] sm:$0xf]
        %v636 = vld [vmem:[#allocation5 + $0x7c] sm:$0xf]
        %v637 = vld [vmem:[#allocation5 + $0x84] sm:$0xf]
        %v638 = vld [vmem:[#allocation5 + $0x8c] sm:$0xf]
        %v639 = vld [vmem:[#allocation5 + $0x94] sm:$0xf]
        %v640 = vld [vmem:[#allocation5 + $0x9c] sm:$0xf]
        %v641 = vld [vmem:[#allocation5 + $0xa4] sm:$0xf]
        %v642 = vld [vmem:[#allocation5 + $0xac] sm:$0xf]
        %v643 = vld [vmem:[#allocation5 + $0xb4] sm:$0xf]
        %v644 = vld [vmem:[#allocation5 + $0xbc] sm:$0xf]
        %v645 = vld [vmem:[#allocation5 + $0xc4] sm:$0xf]
        %v646 = vld [vmem:[#allocation5 + $0xcc] sm:$0xf]
        %v647 = vld [vmem:[#allocation5 + $0xd4] sm:$0xf]
        %v648 = vld [vmem:[#allocation5 + $0xdc] sm:$0xf]
        %v649 = vld [vmem:[#allocation5 + $0xe4] sm:$0xf]
        %v650 = vld [vmem:[#allocation5 + $0xec] sm:$0xf]
        %v651 = vld [vmem:[#allocation5 + $0xf4] sm:$0xf]
        %v652 = vld [vmem:[#allocation5 + $0xfc] sm:$0xf]
        %v685 = vunpack.c.l.b16 %v621
        %v686 = vunpack.c.l.b16 %v622
        %v687 = vunpack.c.l.b16 %v623
        %v688 = vunpack.c.l.b16 %v624
        %v689 = vunpack.c.l.b16 %v625
        %v690 = vunpack.c.l.b16 %v626
        %v691 = vunpack.c.l.b16 %v627
        %v692 = vunpack.c.l.b16 %v628
        %v693 = vunpack.c.l.b16 %v629
        %v694 = vunpack.c.l.b16 %v630
        %v695 = vunpack.c.l.b16 %v631
        %v696 = vunpack.c.l.b16 %v632
        %v697 = vunpack.c.l.b16 %v633
        %v698 = vunpack.c.l.b16 %v634
        %v699 = vunpack.c.l.b16 %v635
        %v700 = vunpack.c.l.b16 %v636
        %v701 = vunpack.c.l.b16 %v637
        %v702 = vunpack.c.l.b16 %v638
        %v703 = vunpack.c.l.b16 %v639
        %v704 = vunpack.c.l.b16 %v640
        %v705 = vunpack.c.l.b16 %v641
        %v706 = vunpack.c.l.b16 %v642
        %v707 = vunpack.c.l.b16 %v643
        %v708 = vunpack.c.l.b16 %v644
        %v709 = vunpack.c.l.b16 %v645
        %v710 = vunpack.c.l.b16 %v646
        %v711 = vunpack.c.l.b16 %v647
        %v712 = vunpack.c.l.b16 %v648
        %v713 = vunpack.c.l.b16 %v649
        %v714 = vunpack.c.l.b16 %v650
        %v715 = vunpack.c.l.b16 %v651
        %v716 = vunpack.c.l.b16 %v652
        %v717 = vpack.c.b16 %v686, %v685
        %v718 = vpack.c.b16 %v688, %v687
        %v719 = vpack.c.b16 %v690, %v689
        %v720 = vpack.c.b16 %v692, %v691
        %v721 = vpack.c.b16 %v694, %v693
        %v722 = vpack.c.b16 %v696, %v695
        %v723 = vpack.c.b16 %v698, %v697
        %v724 = vpack.c.b16 %v700, %v699
        %v725 = vpack.c.b16 %v702, %v701
        %v726 = vpack.c.b16 %v704, %v703
        %v727 = vpack.c.b16 %v706, %v705
        %v728 = vpack.c.b16 %v708, %v707
        %v729 = vpack.c.b16 %v710, %v709
        %v730 = vpack.c.b16 %v712, %v711
        %v731 = vpack.c.b16 %v714, %v713
        %v732 = vpack.c.b16 %v716, %v715
        %749 = vmatprep.subr.bf16.mxu0 0
        %750 = vmatpush1.bf16.msra.mxu0 %v717
        %751 = vmatprep.subr.bf16.mxu0 0
        %752 = vmatpush1.bf16.msra.mxu0 %v718
        %753 = vmatprep.subr.bf16.mxu0 0
        %754 = vmatpush1.bf16.msra.mxu0 %v719
        %755 = vmatprep.subr.bf16.mxu0 0
        %756 = vmatpush1.bf16.msra.mxu0 %v720
        %757 = vmatprep.subr.bf16.mxu0 0
        %758 = vmatpush1.bf16.msra.mxu0 %v721
        %759 = vmatprep.subr.bf16.mxu0 0
        %760 = vmatpush1.bf16.msra.mxu0 %v722
        %761 = vmatprep.subr.bf16.mxu0 0
        %762 = vmatpush1.bf16.msra.mxu0 %v723
        %763 = vmatprep.subr.bf16.mxu0 0
        %764 = vmatpush1.bf16.msra.mxu0 %v724
        %765 = vmatprep.subr.bf16.mxu0 0
        %766 = vmatpush1.bf16.msra.mxu0 %v725
        %767 = vmatprep.subr.bf16.mxu0 0
        %768 = vmatpush1.bf16.msra.mxu0 %v726
        %769 = vmatprep.subr.bf16.mxu0 0
        %770 = vmatpush1.bf16.msra.mxu0 %v727
        %771 = vmatprep.subr.bf16.mxu0 0
        %772 = vmatpush1.bf16.msra.mxu0 %v728
        %773 = vmatprep.subr.bf16.mxu0 0
        %774 = vmatpush1.bf16.msra.mxu0 %v729
        %775 = vmatprep.subr.bf16.mxu0 0
        %776 = vmatpush1.bf16.msra.mxu0 %v730
        %777 = vmatprep.subr.bf16.mxu0 0
        %778 = vmatpush1.bf16.msra.mxu0 %v731
        %779 = vmatprep.subr.bf16.mxu0 0
        %780 = vmatpush1.bf16.msra.mxu0 %v732
        %781 = vmatprep.mubr.bf16.mxu0 %v268
        %782 = vmatmul.mubr.bf16.gmra.mrb[0].mxu0 %v267
        %v783 = vpop.f32.mrb[0].mxu0
        %v784 = vadd.f32 0.0, %v783
        %v785 = vpop.f32.mrb[0].mxu0
        %v786 = vpop.f32.mrb[0].mxu0
        %v787 = vadd.f32 0.0, %v786
        %v788 = vpop.f32.mrb[0].mxu0
        %789 = vdwg.mxu0
        %v790 = vld [vmem:[#allocation2 + $0x2] sm:$0xff]
        %v791 = vld [vmem:[#allocation2 + $0x12] sm:$0xff]
        %v792 = vadd.f32 %v790, %v784
        %v793 = vadd.f32 %v791, %v787
        %794 = vst.msk [vmem:[#allocation2 + $0x2] sm:$0xff] %vm222, %v792
        %795 = vst.msk [vmem:[#allocation2 + $0x12] sm:$0xff] %vm222, %v793
        %v796 = vld [vmem:[#allocation5 + $0x4] sm:$0xf]
        %v797 = vld [vmem:[#allocation5 + $0xc] sm:$0xf]
        %v798 = vld [vmem:[#allocation5 + $0x14] sm:$0xf]
        %v799 = vld [vmem:[#allocation5 + $0x1c] sm:$0xf]
        %v800 = vld [vmem:[#allocation5 + $0x24] sm:$0xf]
        %v801 = vld [vmem:[#allocation5 + $0x2c] sm:$0xf]
        %v802 = vld [vmem:[#allocation5 + $0x34] sm:$0xf]
        %v803 = vld [vmem:[#allocation5 + $0x3c] sm:$0xf]
        %v804 = vld [vmem:[#allocation5 + $0x44] sm:$0xf]
        %v805 = vld [vmem:[#allocation5 + $0x4c] sm:$0xf]
        %v806 = vld [vmem:[#allocation5 + $0x54] sm:$0xf]
        %v807 = vld [vmem:[#allocation5 + $0x5c] sm:$0xf]
        %v808 = vld [vmem:[#allocation5 + $0x64] sm:$0xf]
        %v809 = vld [vmem:[#allocation5 + $0x6c] sm:$0xf]
        %v810 = vld [vmem:[#allocation5 + $0x74] sm:$0xf]
        %v811 = vld [vmem:[#allocation5 + $0x7c] sm:$0xf]
        %v812 = vld [vmem:[#allocation5 + $0x84] sm:$0xf]
        %v813 = vld [vmem:[#allocation5 + $0x8c] sm:$0xf]
        %v814 = vld [vmem:[#allocation5 + $0x94] sm:$0xf]
        %v815 = vld [vmem:[#allocation5 + $0x9c] sm:$0xf]
        %v816 = vld [vmem:[#allocation5 + $0xa4] sm:$0xf]
        %v817 = vld [vmem:[#allocation5 + $0xac] sm:$0xf]
        %v818 = vld [vmem:[#allocation5 + $0xb4] sm:$0xf]
        %v819 = vld [vmem:[#allocation5 + $0xbc] sm:$0xf]
        %v820 = vld [vmem:[#allocation5 + $0xc4] sm:$0xf]
        %v821 = vld [vmem:[#allocation5 + $0xcc] sm:$0xf]
        %v822 = vld [vmem:[#allocation5 + $0xd4] sm:$0xf]
        %v823 = vld [vmem:[#allocation5 + $0xdc] sm:$0xf]
        %v824 = vld [vmem:[#allocation5 + $0xe4] sm:$0xf]
        %v825 = vld [vmem:[#allocation5 + $0xec] sm:$0xf]
        %v826 = vld [vmem:[#allocation5 + $0xf4] sm:$0xf]
        %v827 = vld [vmem:[#allocation5 + $0xfc] sm:$0xf]
        %v860 = vunpack.c.l.b16 %v796
        %v861 = vunpack.c.l.b16 %v797
        %v862 = vunpack.c.l.b16 %v798
        %v863 = vunpack.c.l.b16 %v799
        %v864 = vunpack.c.l.b16 %v800
        %v865 = vunpack.c.l.b16 %v801
        %v866 = vunpack.c.l.b16 %v802
        %v867 = vunpack.c.l.b16 %v803
        %v868 = vunpack.c.l.b16 %v804
        %v869 = vunpack.c.l.b16 %v805
        %v870 = vunpack.c.l.b16 %v806
        %v871 = vunpack.c.l.b16 %v807
        %v872 = vunpack.c.l.b16 %v808
        %v873 = vunpack.c.l.b16 %v809
        %v874 = vunpack.c.l.b16 %v810
        %v875 = vunpack.c.l.b16 %v811
        %v876 = vunpack.c.l.b16 %v812
        %v877 = vunpack.c.l.b16 %v813
        %v878 = vunpack.c.l.b16 %v814
        %v879 = vunpack.c.l.b16 %v815
        %v880 = vunpack.c.l.b16 %v816
        %v881 = vunpack.c.l.b16 %v817
        %v882 = vunpack.c.l.b16 %v818
        %v883 = vunpack.c.l.b16 %v819
        %v884 = vunpack.c.l.b16 %v820
        %v885 = vunpack.c.l.b16 %v821
        %v886 = vunpack.c.l.b16 %v822
        %v887 = vunpack.c.l.b16 %v823
        %v888 = vunpack.c.l.b16 %v824
        %v889 = vunpack.c.l.b16 %v825
        %v890 = vunpack.c.l.b16 %v826
        %v891 = vunpack.c.l.b16 %v827
        %v892 = vpack.c.b16 %v861, %v860
        %v893 = vpack.c.b16 %v863, %v862
        %v894 = vpack.c.b16 %v865, %v864
        %v895 = vpack.c.b16 %v867, %v866
        %v896 = vpack.c.b16 %v869, %v868
        %v897 = vpack.c.b16 %v871, %v870
        %v898 = vpack.c.b16 %v873, %v872
        %v899 = vpack.c.b16 %v875, %v874
        %v900 = vpack.c.b16 %v877, %v876
        %v901 = vpack.c.b16 %v879, %v878
        %v902 = vpack.c.b16 %v881, %v880
        %v903 = vpack.c.b16 %v883, %v882
        %v904 = vpack.c.b16 %v885, %v884
        %v905 = vpack.c.b16 %v887, %v886
        %v906 = vpack.c.b16 %v889, %v888
        %v907 = vpack.c.b16 %v891, %v890
        %908 = vrot.lane.b32.xlu0 %v892, 64
        %v909 = vpop.permute.xlu0 %908
        %910 = vrot.lane.b32.xlu0 %v893, 64
        %v911 = vpop.permute.xlu0 %910
        %912 = vrot.lane.b32.xlu0 %v894, 64
        %v913 = vpop.permute.xlu0 %912
        %914 = vrot.lane.b32.xlu0 %v895, 64
        %v915 = vpop.permute.xlu0 %914
        %916 = vrot.lane.b32.xlu0 %v896, 64
        %v917 = vpop.permute.xlu0 %916
        %918 = vrot.lane.b32.xlu0 %v897, 64
        %v919 = vpop.permute.xlu0 %918
        %920 = vrot.lane.b32.xlu0 %v898, 64
        %v921 = vpop.permute.xlu0 %920
        %922 = vrot.lane.b32.xlu0 %v899, 64
        %v923 = vpop.permute.xlu0 %922
        %924 = vrot.lane.b32.xlu0 %v900, 64
        %v925 = vpop.permute.xlu0 %924
        %926 = vrot.lane.b32.xlu0 %v901, 64
        %v927 = vpop.permute.xlu0 %926
        %928 = vrot.lane.b32.xlu0 %v902, 64
        %v929 = vpop.permute.xlu0 %928
        %930 = vrot.lane.b32.xlu0 %v903, 64
        %v931 = vpop.permute.xlu0 %930
        %932 = vrot.lane.b32.xlu0 %v904, 64
        %v933 = vpop.permute.xlu0 %932
        %934 = vrot.lane.b32.xlu0 %v905, 64
        %v935 = vpop.permute.xlu0 %934
        %936 = vrot.lane.b32.xlu0 %v906, 64
        %v937 = vpop.permute.xlu0 %936
        %938 = vrot.lane.b32.xlu0 %v907, 64
        %v939 = vpop.permute.xlu0 %938
        %956 = vmatprep.subr.bf16.mxu0 0
        %957 = vmatpush1.bf16.msra.mxu0 %v909
        %958 = vmatprep.subr.bf16.mxu0 0
        %959 = vmatpush1.bf16.msra.mxu0 %v911
        %960 = vmatprep.subr.bf16.mxu0 0
        %961 = vmatpush1.bf16.msra.mxu0 %v913
        %962 = vmatprep.subr.bf16.mxu0 0
        %963 = vmatpush1.bf16.msra.mxu0 %v915
        %964 = vmatprep.subr.bf16.mxu0 0
        %965 = vmatpush1.bf16.msra.mxu0 %v917
        %966 = vmatprep.subr.bf16.mxu0 0
        %967 = vmatpush1.bf16.msra.mxu0 %v919
        %968 = vmatprep.subr.bf16.mxu0 0
        %969 = vmatpush1.bf16.msra.mxu0 %v921
        %970 = vmatprep.subr.bf16.mxu0 0
        %971 = vmatpush1.bf16.msra.mxu0 %v923
        %972 = vmatprep.subr.bf16.mxu0 0
        %973 = vmatpush1.bf16.msra.mxu0 %v925
        %974 = vmatprep.subr.bf16.mxu0 0
        %975 = vmatpush1.bf16.msra.mxu0 %v927
        %976 = vmatprep.subr.bf16.mxu0 0
        %977 = vmatpush1.bf16.msra.mxu0 %v929
        %978 = vmatprep.subr.bf16.mxu0 0
        %979 = vmatpush1.bf16.msra.mxu0 %v931
        %980 = vmatprep.subr.bf16.mxu0 0
        %981 = vmatpush1.bf16.msra.mxu0 %v933
        %982 = vmatprep.subr.bf16.mxu0 0
        %983 = vmatpush1.bf16.msra.mxu0 %v935
        %984 = vmatprep.subr.bf16.mxu0 0
        %985 = vmatpush1.bf16.msra.mxu0 %v937
        %986 = vmatprep.subr.bf16.mxu0 0
        %987 = vmatpush1.bf16.msra.mxu0 %v939
        %988 = vmatprep.mubr.bf16.mxu0 %v268
        %989 = vmatmul.mubr.bf16.gmra.mrb[0].mxu0 %v267
        %v990 = vpop.f32.mrb[0].mxu0
        %v991 = vadd.f32 0.0, %v990
        %v992 = vpop.f32.mrb[0].mxu0
        %v993 = vpop.f32.mrb[0].mxu0
        %v994 = vadd.f32 0.0, %v993
        %v995 = vpop.f32.mrb[0].mxu0
        %996 = vdwg.mxu0
        %v997 = vld [vmem:[#allocation2 + $0x3] sm:$0xff]
        %v998 = vld [vmem:[#allocation2 + $0x13] sm:$0xff]
        %v999 = vadd.f32 %v997, %v991
        %v1000 = vadd.f32 %v998, %v994
        %1001 = vst.msk [vmem:[#allocation2 + $0x3] sm:$0xff] %vm222, %v999
        %1002 = vst.msk [vmem:[#allocation2 + $0x13] sm:$0xff] %vm222, %v1000
        %v1003 = vld [vmem:[#allocation2 + $0x2] sm:$0x7f]
        %v1004 = vld [vmem:[#allocation2 + $0x12] sm:$0x7f]
        %v1005 = vld [vmem:[#allocation7] sm:$0x7f]
        %v1006 = vmul.f32 %v1003, %v1005
        %v1007 = vmul.f32 %v1004, %v1005
        %vm1008 = vcmask 522240
        %1009 = vst.msk [vmem:[%s219] sm:$0x7f] %vm1008, %v1006
        %1010 = vst.msk [vmem:[%s219 + $0x8] sm:$0x7f] %vm1008, %v1007
        %s1011 = smul.u32 2, %s18
        %p1012 = scmp.lt.s32.totalorder %s1011, 3
        %s1013 = scalar_select %p1012, %s1011, 3
        %s1014 = smul.addr %s1013, 8
        %s1015 = scalar_lea.vmem %s3, %s1014
        // Predicated region
        $region45: #{tpu_custom_call.1} parent=31 // pred_check
          %p1016 = pneg %p104
        $region46: #{tpu_custom_call.1} parent=31 // pred_check_branch
          %1018 = sbr.rel (%p1016) target = $region48
        $region47: #{tpu_custom_call.1} parent=31 // pred_region
          %s1019 = smul.u32 2, %s18
        $region48: #{tpu_custom_call.1} parent=31 // pred_fallthru
          _
      $region32: #{tpu_custom_call.1} parent=5 // pred_fallthru
        _
      %p1020 = scmp.le.s32.totalorder 2, %s13
      // Predicated region
      $region49: #{tpu_custom_call.1} parent=5 // pred_check
        %p1021 = pneg %p1020
      $region50: #{tpu_custom_call.1} parent=5 // pred_check_branch
        %1023 = sbr.rel (%p1021) target = $region52
      $region51: #{tpu_custom_call.1} parent=5 // pred_region
        %s1024 = ssub.s32 %s13, 2
        // Predicated region
        $region53: #{tpu_custom_call.1} parent=51 // pred_check
          %p1025 = pneg %p110
        $region54: #{tpu_custom_call.1} parent=51 // pred_check_branch
          %1027 = sbr.rel (%p1025) target = $region56
        $region55: #{tpu_custom_call.1} parent=51 // pred_region
          %s1028 = smul.u32 2, %s19
          %p1029 = scmp.lt.s32.totalorder %s1028, 3
          %s1030 = scalar_select %p1029, %s1028, 3
          %s1031 = smul.addr %s1030, 8
          %s1032 = scalar_lea.vmem %s3, %s1031
        $region56: #{tpu_custom_call.1} parent=51 // pred_fallthru
          _
      $region52: #{tpu_custom_call.1} parent=5 // pred_fallthru
        _
    $region6: #{tpu_custom_call.1} parent=1 // loop_footer
      %s17 = sadd.s32 1, %s13
    $region7: #{tpu_custom_call.1} parent=1 // loop_footer_branch
      %12 = sbr.rel target = $region3
    $region8: #{tpu_custom_call.1} parent=1 // loop_exit
      _
    %1033 = vsyncpa [#allocation4], 1
    %s1034 = scalar_lea.sflag [#allocation4], 1
    %1035 = vsyncpa %s1034, 1
    %1036 = vsyncpa [#allocation6], 1

</llo_original>
